<compile_context>
chip_gen: v6e
topology: v6e:2x2x1
jax: 0.10.0
libtpu: 0.0.40
codegen_flags: <defaults>
</compile_context>

<pallas_src>
import functools
import math

import jax
import jax.numpy as jnp
from jax.experimental import pallas as pl
from jax.experimental.pallas import tpu as pltpu


# ---------------------------------------------------------------------------
# Parameter / buffer setup (plain JAX glue, deterministic)
# ---------------------------------------------------------------------------
def make_sinusoidal_pe(d_model: int, max_seq_length: int) -> jnp.ndarray:
    """Replicates the `pe` buffer from __init__ (unused in forward, kept for fidelity)."""
    position = jnp.arange(0, max_seq_length, dtype=jnp.float32)[:, None]          # (S, 1)
    div_term = jnp.exp(
        jnp.arange(0, d_model, 2, dtype=jnp.float32) * -(math.log(10000.0) / d_model)
    )                                                                              # (D/2,)
    pe = jnp.zeros((max_seq_length, d_model), dtype=jnp.float32)
    pe = pe.at[:, 0::2].set(jnp.sin(position * div_term))
    pe = pe.at[:, 1::2].set(jnp.cos(position * div_term))
    return pe[None, :, :]                                                          # (1, S, D)


# ---------------------------------------------------------------------------
# Pallas kernels
# ---------------------------------------------------------------------------
def _mul_broadcast_kernel(x_ref, d_ref, o_ref):
    # x_ref: (TR, L) tile, d_ref: (TR, 1) tile -> broadcast multiply along lanes.
    o_ref[...] = x_ref[...] * d_ref[...]


def _mul_packed_kernel(x_ref, d_ref, o_ref, *, d_model, rows_per_pack):
    # Lane-dense path (original D < 128).
    #   x_ref: (TR, 128) -- each packed row holds `rows_per_pack` original rows,
    #          each contributing `d_model` consecutive lanes.
    #   d_ref: (TR, rows_per_pack) -- one decay scalar per original row.
    # Expand decay to (TR, 128) with a static select chain on the lane index
    # (pure VPU work, reliably lowers; MXU/XLU stay idle anyway).
    x = x_ref[...]
    d = d_ref[...]
    lane = jax.lax.broadcasted_iota(jnp.int32, x.shape, 1)
    expanded = jnp.broadcast_to(d[:, 0:1], x.shape)
    for k in range(1, rows_per_pack):
        expanded = jnp.where(lane >= k * d_model, d[:, k:k + 1], expanded)
    o_ref[...] = x * expanded.astype(x.dtype)


# ---------------------------------------------------------------------------
# Wrapper
# ---------------------------------------------------------------------------
def _pick_row_tile(rows: int, row_bytes: int,
                   target_tile_bytes: int = 4 << 20, max_rows: int = 1024) -> int:
    """Largest row tile (multiple of 8, <= max_rows) with x-tile <= target_tile_bytes.

    Keeps double-buffered x/out tiles + padded decay tile comfortably under the
    32 MiB scoped-VMEM default on every generation (incl. v7x's 64 MiB VMEM).
    """
    if rows <= 8:
        return rows
    tr = max(8, min(max_rows, target_tile_bytes // max(row_bytes, 1)))
    tr = (tr // 8) * 8
    return min(tr, rows)


def positional_encoding_forward(x: jnp.ndarray, time_decay: jnp.ndarray) -> jnp.ndarray:
    """x: (B, S, D); time_decay broadcastable to (B, S, 1). Returns x * time_decay."""
    B, S, D = x.shape
    time_decay = jnp.broadcast_to(time_decay.astype(x.dtype), (B, S, 1))

    n_rows = B * S
    n_elems = n_rows * D
    itemsize = jnp.dtype(x.dtype).itemsize

    x2 = x.reshape(n_rows, D)            # contiguous -> free reshape
    d2 = time_decay.reshape(n_rows, 1)   # contiguous -> free reshape

    if D < 128 and 128 % D == 0 and n_rows % (128 // D) == 0:
        # Lane-dense packing: fold 128/D consecutive rows into one 128-lane row.
        rpp = 128 // D
        rows, lanes, d_cols = n_rows // rpp, 128, rpp
        x_in = x2.reshape(rows, lanes)
        d_in = d2.reshape(rows, rpp)
        kernel = functools.partial(_mul_packed_kernel, d_model=D, rows_per_pack=rpp)
    else:
        # D already lane-dense (multiple of 128) or irregular: full-D blocks.
        rows, lanes, d_cols = n_rows, D, 1
        x_in, d_in = x2, d2
        kernel = _mul_broadcast_kernel

    tr = _pick_row_tile(rows, lanes * itemsize)
    grid = (pl.cdiv(rows, tr),)

    cost = pl.CostEstimate(
        flops=n_elems,
        transcendentals=0,
        bytes_accessed=(2 * n_elems + n_rows) * itemsize,
    )

    out2 = pl.pallas_call(
        kernel,
        out_shape=jax.ShapeDtypeStruct((rows, lanes), x.dtype),
        grid=grid,
        in_specs=[
            pl.BlockSpec((tr, lanes), lambda i: (i, 0)),
            pl.BlockSpec((tr, d_cols), lambda i: (i, 0)),
        ],
        out_specs=pl.BlockSpec((tr, lanes), lambda i: (i, 0)),
        compiler_params=pltpu.CompilerParams(
            dimension_semantics=("parallel",),
            vmem_limit_bytes=32 * 1024 * 1024,
        ),
        cost_estimate=cost,
    )(x_in, d_in)

    return out2.reshape(B, S, D)


# ---------------------------------------------------------------------------
# Demo / correctness check
# ---------------------------------------------------------------------------
if __name__ == "__main__":
    d_model = 32
    max_seq_length = 8
    batch = 2

    key = jax.random.PRNGKey(0)
    kx, kd = jax.random.split(key)

    # Input activations (B, S, D)
    x = jax.random.normal(kx, (batch, max_seq_length, d_model), dtype=jnp.float32)

    # time_decay_matrix as passed to __init__, last dim 1 (expanded to d_model
    # by broadcasting, matching torch's .expand(..., d_model)).
    time_decay = jax.random.uniform(
        kd, (batch, max_seq_length, 1), dtype=jnp.float32, minval=0.1, maxval=1.0
    )

    # Build the (unused-in-forward) sinusoidal pe buffer, as __init__ does.
    pe = make_sinusoidal_pe(d_model, max_seq_length)  # noqa: F841 (buffer, unused in forward)

    out = positional_encoding_forward(x, time_decay)
    out = jax.block_until_ready(out)

    # Reference: torch.mul(x, time_decay_matrix.expand(..., d_model))
    ref = x * jnp.broadcast_to(time_decay, x.shape)

    assert out.shape == x.shape
    assert jnp.allclose(out, ref, atol=1e-6, rtol=1e-6)
    print("KERNEL_OK")
</pallas_src>

<mosaic_0001>
module attributes {stable_mosaic.version = 11 : i64} {
  func.func @_mul_packed_kernel(%arg0: i32, %arg1: memref<4x128xf32, #tpu.memory_space<vmem>>, %arg2: memref<4x4xf32, #tpu.memory_space<vmem>>, %arg3: memref<4x128xf32, #tpu.memory_space<vmem>>) attributes {dimension_semantics = [#tpu.dimension_semantics<parallel>], iteration_bounds = array<i64: 1>, scalar_prefetch = 0 : i64, scratch_operands = 0 : i64, tpu.core_type = #tpu.core_type<tc>, window_params = [{transform_indices = @transform_0, window_bounds = array<i64: 4, 128>}, {transform_indices = @transform_1, window_bounds = array<i64: 4, 4>}, {transform_indices = @transform_2, window_bounds = array<i64: 4, 128>}]} {
    %c0 = arith.constant 0 : index
    %c0_0 = arith.constant 0 : index
    %0 = vector.load %arg1[%c0, %c0_0] : memref<4x128xf32, #tpu.memory_space<vmem>>, vector<4x128xf32>
    %c0_1 = arith.constant 0 : index
    %c0_2 = arith.constant 0 : index
    %1 = vector.load %arg2[%c0_1, %c0_2] : memref<4x4xf32, #tpu.memory_space<vmem>>, vector<4x4xf32>
    %2 = tpu.iota {dimensions = array<i32: 1>} : vector<4x128xi32>
    %3 = vector.extract_strided_slice %1 {offsets = [0, 0], sizes = [4, 1], strides = [1, 1]} : vector<4x4xf32> to vector<4x1xf32>
    %4 = vector.shape_cast %3 : vector<4x1xf32> to vector<4x1xf32>
    %5 = vector.broadcast %4 : vector<4x1xf32> to vector<4x128xf32>
    %c32_i32 = arith.constant 32 : i32
    %6 = vector.broadcast %c32_i32 : i32 to vector<4x128xi32>
    %7 = arith.cmpi sge, %2, %6 : vector<4x128xi32>
    %8 = vector.extract_strided_slice %1 {offsets = [0, 1], sizes = [4, 1], strides = [1, 1]} : vector<4x4xf32> to vector<4x1xf32>
    %9 = vector.shape_cast %8 : vector<4x1xf32> to vector<4x1xf32>
    %10 = vector.broadcast %9 : vector<4x1xf32> to vector<4x128xf32>
    %11 = arith.select %7, %10, %5 : vector<4x128xi1>, vector<4x128xf32>
    %c64_i32 = arith.constant 64 : i32
    %12 = vector.broadcast %c64_i32 : i32 to vector<4x128xi32>
    %13 = arith.cmpi sge, %2, %12 : vector<4x128xi32>
    %14 = vector.extract_strided_slice %1 {offsets = [0, 2], sizes = [4, 1], strides = [1, 1]} : vector<4x4xf32> to vector<4x1xf32>
    %15 = vector.shape_cast %14 : vector<4x1xf32> to vector<4x1xf32>
    %16 = vector.broadcast %15 : vector<4x1xf32> to vector<4x128xf32>
    %17 = arith.select %13, %16, %11 : vector<4x128xi1>, vector<4x128xf32>
    %c96_i32 = arith.constant 96 : i32
    %18 = vector.broadcast %c96_i32 : i32 to vector<4x128xi32>
    %19 = arith.cmpi sge, %2, %18 : vector<4x128xi32>
    %20 = vector.extract_strided_slice %1 {offsets = [0, 3], sizes = [4, 1], strides = [1, 1]} : vector<4x4xf32> to vector<4x1xf32>
    %21 = vector.shape_cast %20 : vector<4x1xf32> to vector<4x1xf32>
    %22 = vector.broadcast %21 : vector<4x1xf32> to vector<4x128xf32>
    %23 = arith.select %19, %22, %17 : vector<4x128xi1>, vector<4x128xf32>
    %24 = arith.mulf %0, %23 : vector<4x128xf32>
    %c0_3 = arith.constant 0 : index
    %c0_4 = arith.constant 0 : index
    %25 = vector.load %arg3[%c0_3, %c0_4] : memref<4x128xf32, #tpu.memory_space<vmem>>, vector<4x128xf32>
    tpu.vector_store %arg3[%c0_3, %c0_4], %24 {strides = array<i32>} : memref<4x128xf32, #tpu.memory_space<vmem>>, vector<4x128xf32>,
    return
  }
  func.func @transform_0(%arg0: i32) -> (i32, i32) {
    %c0_i32 = arith.constant 0 : i32
    %c0_i32_0 = arith.constant 0 : i32
    return %arg0, %c0_i32 : i32, i32
  }
  func.func @transform_1(%arg0: i32) -> (i32, i32) {
    %c0_i32 = arith.constant 0 : i32
    %c0_i32_0 = arith.constant 0 : i32
    return %arg0, %c0_i32 : i32, i32
  }
  func.func @transform_2(%arg0: i32) -> (i32, i32) {
    %c0_i32 = arith.constant 0 : i32
    %c0_i32_0 = arith.constant 0 : i32
    return %arg0, %c0_i32 : i32, i32
  }
}

</mosaic_0001>

<llo_original>
// kernel: tpu_custom_call.1
$region0: #{tpu_custom_call.1}
  #allocation0 [shape = 'u32[]', space=smem, size = 0x4, offset = 0x4, fixed_abs, tag = 'smem constant byte address 0x4 - core index']
  #allocation1 [shape = 'u32[144,128]{1,0:T(1,128)}', space=vmem, size = 0x12000, scoped, tag = 'internal scratch']
  %s0 = inlined_call_operand.hbm [shape: f32[4,128], index: 0, kind: input, shape index: {}]
  %s1 = inlined_call_operand.hbm [shape: f32[4,4], index: 1, kind: input, shape index: {}]
  %s2 = inlined_call_operand.hbm [shape: f32[4,128], index: 2, kind: output, shape index: {}]
  %s3 = sld [smem:[#allocation0]]
  $region26: #{tpu_custom_call.1} parent=0
    _
  %s5 = ssub.s32 1, %s3
  %s6 = scalar_select 0, %s5, %s3
  $region1: #{tpu_custom_call.1} parent=0
    #allocation2 [shape = 'u8[2048]{0}', space=vmem, size = 0x800, scoped, tag = 'input window, operand 0, single buffered']
    #allocation3 [shape = 's32[1]{0}', space=sflag, size = 0x4, scoped, tag = 'scoped memory for tpu_custom_call.1']
    #allocation4 [shape = 's32[1]{0}', space=sflag, size = 0x4, scoped, tag = 'scoped memory for tpu_custom_call.1']
    #allocation5 [shape = 'u8[2048]{0}', space=vmem, size = 0x800, scoped, tag = 'input window, operand 1, single buffered']
    #allocation6 [shape = 's32[1]{0}', space=sflag, size = 0x4, scoped, tag = 'scoped memory for tpu_custom_call.1']
    #allocation7 [shape = 'u8[2048]{0}', space=vmem, size = 0x800, scoped, tag = 'output window, operand 0, single buffered']
    %7 = vsyncpa [#allocation3], 0
    %8 = vsyncpa [#allocation6], 0
    %9 = vsyncpa [#allocation4], 0
    // Predicated region
    $region2: #{tpu_custom_call.1} parent=1 // pred_check
      _
    $region3: #{tpu_custom_call.1} parent=1 // pred_check_branch
      %11 = sbr.rel (0) target = $region5
    $region4: #{tpu_custom_call.1} parent=1 // pred_region
      %s13 = ssub.s32 64, 64
      %14 = vsyncadd [#allocation3], %s13
      %s16 = sshll.u32 [#allocation2], 4
      %s17 = int_to_ptr.vmem [resolvable:$true] %s16
      %19 = dma.hbm_to_vmem [thread:$0]  %s0, 64, %s17, [#allocation3]
    $region5: #{tpu_custom_call.1} parent=1 // pred_fallthru
      _
    // Predicated region
    $region6: #{tpu_custom_call.1} parent=1 // pred_check
      _
    $region7: #{tpu_custom_call.1} parent=1 // pred_check_branch
      %21 = sbr.rel (0) target = $region9
    $region8: #{tpu_custom_call.1} parent=1 // pred_region
      %s23 = ssub.s32 64, 64
      %24 = vsyncadd [#allocation6], %s23
      %s26 = sshll.u32 [#allocation5], 4
      %s27 = int_to_ptr.vmem [resolvable:$true] %s26
      %29 = dma.hbm_to_vmem [thread:$0]  %s1, 64, %s27, [#allocation6]
    $region9: #{tpu_custom_call.1} parent=1 // pred_fallthru
      _
    // Predicated region
    $region10: #{tpu_custom_call.1} parent=1 // pred_check
      _
    $region11: #{tpu_custom_call.1} parent=1 // pred_check_branch
      %31 = sbr.rel (0) target = $region13
    $region12: #{tpu_custom_call.1} parent=1 // pred_region
      %32 = dma.done [#allocation3], 64
    $region13: #{tpu_custom_call.1} parent=1 // pred_fallthru
      _
    // Predicated region
    $region14: #{tpu_custom_call.1} parent=1 // pred_check
      _
    $region15: #{tpu_custom_call.1} parent=1 // pred_check_branch
      %34 = sbr.rel (0) target = $region17
    $region16: #{tpu_custom_call.1} parent=1 // pred_region
      %35 = dma.done [#allocation6], 64
    $region17: #{tpu_custom_call.1} parent=1 // pred_fallthru
      _
    %v36 = vld [vmem:[#allocation2] sm:$0xf]
    %v37 = vld [vmem:[#allocation5] sm:$0xf]
    %v38 = vlaneseq
    %v39 = vand.u32 %v38, 127
    %41 = vset.pattern.permute.xlu0 0
    %42 = vperm.xlu0 %41, %v37
    %v43 = vpop.permute.xlu0 %42
    %vm45 = vcmp.ge.s32.totalorder %v39, 32
    %46 = vset.pattern.permute.xlu0 1
    %47 = vperm.xlu0 %46, %v37
    %v48 = vpop.permute.xlu0 %47
    %v50 = vsel %vm45, %v48, %v43
    %vm51 = vcmp.ge.s32.totalorder %v39, 64
    %52 = vset.pattern.permute.xlu0 2
    %53 = vperm.xlu0 %52, %v37
    %v54 = vpop.permute.xlu0 %53
    %v56 = vsel %vm51, %v54, %v50
    %vm57 = vcmp.ge.s32.totalorder %v39, 96
    %58 = vset.pattern.permute.xlu0 3
    %59 = vperm.xlu0 %58, %v37
    %v60 = vpop.permute.xlu0 %59
    %v62 = vsel %vm57, %v60, %v56
    %v63 = vmul.f32 %v36, %v62
    %64 = vst [vmem:[#allocation7] sm:$0xf] %v63
    // Predicated region
    $region18: #{tpu_custom_call.1} parent=1 // pred_check
      _
    $region19: #{tpu_custom_call.1} parent=1 // pred_check_branch
      %66 = sbr.rel (0) target = $region21
    $region20: #{tpu_custom_call.1} parent=1 // pred_region
      %s68 = ssub.s32 64, 64
      %69 = vsyncadd [#allocation4], %s68
      %s71 = sshll.u32 [#allocation7], 4
      %s72 = int_to_ptr.vmem [resolvable:$true] %s71
      %74 = dma.vmem_to_hbm [thread:$0]  %s72, 64, %s2, [#allocation4]
    $region21: #{tpu_custom_call.1} parent=1 // pred_fallthru
      _
    // Predicated region
    $region22: #{tpu_custom_call.1} parent=1 // pred_check
      _
    $region23: #{tpu_custom_call.1} parent=1 // pred_check_branch
      %76 = sbr.rel (0) target = $region25
    $region24: #{tpu_custom_call.1} parent=1 // pred_region
      %77 = dma.done [#allocation4], 64
    $region25: #{tpu_custom_call.1} parent=1 // pred_fallthru
      _
    %78 = vsyncpa [#allocation3], 1
    %79 = vsyncpa [#allocation6], 1
    %80 = vsyncpa [#allocation4], 1

</llo_original>
